<compile_context>
chip_gen: v6e
topology: v6e:2x2x1
jax: 0.10.0
libtpu: 0.0.40
codegen_flags: <defaults>
</compile_context>

<pallas_src>
import jax
import jax.numpy as jnp
from jax.experimental import pallas as pl
from jax.experimental.pallas import tpu as pltpu

LN_EPS = 1e-6  # iTPN uses partial(nn.LayerNorm, eps=1e-6)


def _patch_split_kernel(x_ref, gb_ref, w_ref, o_ref):
    # x_ref : (tm, C)        tile of flattened tokens (input dtype)
    # gb_ref: (2,  C)  f32   row 0 = LayerNorm gamma, row 1 = LayerNorm beta
    # w_ref : (C, 4F)        Linear weight, [in, out] layout, resident in VMEM
    # o_ref : (tm, 4F)       output tile (input dtype)
    x = x_ref[...].astype(jnp.float32)
    mean = jnp.mean(x, axis=-1, keepdims=True)
    xc = x - mean
    var = jnp.mean(xc * xc, axis=-1, keepdims=True)
    xn = xc * jax.lax.rsqrt(var + LN_EPS)
    xn = xn * gb_ref[0:1, :] + gb_ref[1:2, :]
    # MXU matmul in the weight's dtype, f32 accumulation.
    y = jnp.dot(xn.astype(w_ref.dtype), w_ref[...],
                preferred_element_type=jnp.float32)
    o_ref[...] = y.astype(o_ref.dtype)


def _round_up(a, b):
    return ((a + b - 1) // b) * b


def _choose_block_tokens(M, C, out_dim, x_bytes, w_bytes, o_bytes,
                         vmem_budget_bytes=32 * 1024 * 1024):
    """Largest power-of-two token tile (>= 8) whose working set fits the budget."""
    cap = max(8, min(1024, _round_up(M, 8)))
    tm, t = 8, 8
    while t <= cap:
        need = (2 * t * C * x_bytes            # double-buffered input tile
                + 2 * t * out_dim * o_bytes    # double-buffered output tile
                + 2 * C * out_dim * w_bytes    # resident weight (revolving pair)
                + t * C * 4                    # f32 LN intermediate
                + t * out_dim * 4)             # f32 matmul accumulator
        if need <= vmem_budget_bytes:
            tm = t
        t *= 2
    return tm


def patch_split(x, ln_gamma, ln_beta, red_weight, fpn_dim, *, block_tokens=None):
    """PatchSplit.forward.

    x: (B, N, H, W, C);  red_weight: (4*fpn_dim, C)  (PyTorch [out, in] layout).
    Returns (B, N, 2H, 2W, fpn_dim) in x.dtype.
    """
    B, N, H, W, C = x.shape
    out_dim = 4 * fpn_dim
    assert red_weight.shape == (out_dim, C)

    M = B * N * H * W
    x2d = x.reshape(M, C)
    w = jnp.transpose(red_weight)                        # (C, 4F), dtype unchanged
    gb = jnp.stack([ln_gamma.astype(jnp.float32),
                    ln_beta.astype(jnp.float32)], axis=0).reshape(2, C)

    tm = block_tokens or _choose_block_tokens(
        M, C, out_dim,
        x.dtype.itemsize, w.dtype.itemsize, x.dtype.itemsize)
    grid = (pl.cdiv(M, tm),)                             # partial last block is fine

    y2d = pl.pallas_call(
        _patch_split_kernel,
        out_shape=jax.ShapeDtypeStruct((M, out_dim), x.dtype),
        grid_spec=pltpu.PrefetchScalarGridSpec(
            num_scalar_prefetch=0,
            grid=grid,
            in_specs=[
                pl.BlockSpec((tm, C), lambda i: (i, 0)),
                pl.BlockSpec((2, C), lambda i: (0, 0)),          # gamma/beta, resident
                pl.BlockSpec((C, out_dim), lambda i: (0, 0)),    # weight, fetched once
            ],
            out_specs=pl.BlockSpec((tm, out_dim), lambda i: (i, 0)),
        ),
        compiler_params=pltpu.CompilerParams(
            dimension_semantics=("parallel",),
            vmem_limit_bytes=44 * 1024 * 1024),
    )(x2d, gb, w)

    if W == 1:
        # Pixel shuffle degenerates to a pure (free) reshape when W == 1 — the
        # layout iTPN's FPN feeds into split_16to8 (x[..., None, None, :]).
        return y2d.reshape(B, N, 2 * H, 2 * W, fpn_dim)

    # TODO(synk): for W > 1 fuse this (W, 2) interleave into the kernel's output
    # stores (inherent sublane<->lane shuffle); kept as one XLA transpose of the
    # lane-dense slab.
    y = y2d.reshape(B, N, H, W, 2, 2, fpn_dim)
    y = jnp.transpose(y, (0, 1, 2, 4, 3, 5, 6))
    return y.reshape(B, N, 2 * H, 2 * W, fpn_dim)


def _reference(x, ln_gamma, ln_beta, red_weight, fpn_dim):
    """Pure-JAX f32 reference of PatchSplit.forward."""
    B, N, H, W, C = x.shape
    xf = x.astype(jnp.float32)
    mean = jnp.mean(xf, axis=-1, keepdims=True)
    var = jnp.mean(jnp.square(xf - mean), axis=-1, keepdims=True)
    xn = (xf - mean) * jax.lax.rsqrt(var + LN_EPS)
    xn = xn * ln_gamma.astype(jnp.float32) + ln_beta.astype(jnp.float32)
    y = xn @ red_weight.astype(jnp.float32).T
    y = y.reshape(B, N, H, W, 2, 2, fpn_dim)
    y = jnp.transpose(y, (0, 1, 2, 4, 3, 5, 6))
    return y.reshape(B, N, 2 * H, 2 * W, fpn_dim)


if __name__ == "__main__":
    key = jax.random.PRNGKey(0)
    k0, k1, k2, k3 = jax.random.split(key, 4)

    # Small shapes consistent with the module; 4*fpn_dim = 128 keeps output stores
    # lane-dense.
    B, N, H, W, C = 2, 8, 2, 2, 256
    fpn_dim = 32

    x = jax.random.normal(k0, (B, N, H, W, C), dtype=jnp.float32)
    ln_gamma = 1.0 + 0.01 * jax.random.normal(k1, (C,), dtype=jnp.float32)
    ln_beta = 0.01 * jax.random.normal(k2, (C,), dtype=jnp.float32)
    red_weight = jax.random.normal(k3, (4 * fpn_dim, C), dtype=jnp.float32) * (C ** -0.5)

    ref = _reference(x, ln_gamma, ln_beta, red_weight, fpn_dim)

    # 1) f32 path (matches the PyTorch module's default dtype) — tight tolerance.
    out_f32 = jax.block_until_ready(
        patch_split(x, ln_gamma, ln_beta, red_weight, fpn_dim))
    assert out_f32.shape == (B, N, 2 * H, 2 * W, fpn_dim), out_f32.shape
    assert jnp.allclose(out_f32, ref, atol=1e-4, rtol=1e-4), \
        float(jnp.max(jnp.abs(out_f32 - ref)))

    # 2) bf16 activations + weight (MXU fast path, f32 accumulation) — compare
    #    against an f32 reference computed from the same bf16-rounded inputs.
    x_bf = x.astype(jnp.bfloat16)
    w_bf = red_weight.astype(jnp.bfloat16)
    out_bf16 = jax.block_until_ready(
        patch_split(x_bf, ln_gamma, ln_beta, w_bf, fpn_dim))
    ref_bf = _reference(x_bf.astype(jnp.float32), ln_gamma, ln_beta,
                        w_bf.astype(jnp.float32), fpn_dim)
    assert out_bf16.dtype == jnp.bfloat16
    err = float(jnp.max(jnp.abs(out_bf16.astype(jnp.float32) - ref_bf)))
    assert err < 0.06, err

    # 3) H == W == 1 layout (the shape iTPN's FPN actually feeds): pure-reshape path.
    xb = jax.random.normal(k0, (2, 4, 1, 1, C), dtype=jnp.float32)
    out_w1 = jax.block_until_ready(
        patch_split(xb, ln_gamma, ln_beta, red_weight, fpn_dim))
    ref_w1 = _reference(xb, ln_gamma, ln_beta, red_weight, fpn_dim)
    assert out_w1.shape == (2, 4, 2, 2, fpn_dim), out_w1.shape
    assert jnp.allclose(out_w1, ref_w1, atol=1e-4, rtol=1e-4), \
        float(jnp.max(jnp.abs(out_w1 - ref_w1)))

    print("KERNEL_OK")
</pallas_src>

<mosaic_0001>
module attributes {stable_mosaic.version = 11 : i64} {
  func.func @_patch_split_kernel(%arg0: i32, %arg1: memref<64x256xf32, #tpu.memory_space<vmem>>, %arg2: memref<2x256xf32, #tpu.memory_space<vmem>>, %arg3: memref<256x128xf32, #tpu.memory_space<vmem>>, %arg4: memref<64x128xf32, #tpu.memory_space<vmem>>) attributes {dimension_semantics = [#tpu.dimension_semantics<parallel>], iteration_bounds = array<i64: 1>, scalar_prefetch = 0 : i64, scratch_operands = 0 : i64, tpu.core_type = #tpu.core_type<tc>, window_params = [{transform_indices = @transform_0, window_bounds = array<i64: 64, 256>}, {pipeline_mode = #tpu.pipeline_mode<synchronous>, transform_indices = @transform_1, window_bounds = array<i64: 2, 256>}, {pipeline_mode = #tpu.pipeline_mode<synchronous>, transform_indices = @transform_2, window_bounds = array<i64: 256, 128>}, {transform_indices = @transform_3, window_bounds = array<i64: 64, 128>}]} {
    %c0 = arith.constant 0 : index
    %c0_0 = arith.constant 0 : index
    %0 = vector.load %arg1[%c0, %c0_0] : memref<64x256xf32, #tpu.memory_space<vmem>>, vector<64x256xf32>
    %cst = arith.constant dense<0.000000e+00> : vector<64xf32>
    %1 = vector.multi_reduction <add>, %0, %cst [1] : vector<64x256xf32> to vector<64xf32>
    %2 = vector.shape_cast %1 : vector<64xf32> to vector<64x1xf32>
    %cst_1 = arith.constant 2.560000e+02 : f32
    %3 = vector.broadcast %cst_1 : f32 to vector<64x1xf32>
    %4 = arith.divf %2, %3 : vector<64x1xf32>
    %5 = vector.broadcast %4 : vector<64x1xf32> to vector<64x256xf32>
    %6 = arith.subf %0, %5 : vector<64x256xf32>
    %7 = arith.mulf %6, %6 : vector<64x256xf32>
    %cst_2 = arith.constant dense<0.000000e+00> : vector<64xf32>
    %8 = vector.multi_reduction <add>, %7, %cst_2 [1] : vector<64x256xf32> to vector<64xf32>
    %9 = vector.shape_cast %8 : vector<64xf32> to vector<64x1xf32>
    %cst_3 = arith.constant 2.560000e+02 : f32
    %10 = vector.broadcast %cst_3 : f32 to vector<64x1xf32>
    %11 = arith.divf %9, %10 : vector<64x1xf32>
    %cst_4 = arith.constant 9.99999997E-7 : f32
    %12 = vector.broadcast %cst_4 : f32 to vector<64x1xf32>
    %13 = arith.addf %11, %12 : vector<64x1xf32>
    %14 = math.rsqrt %13 : vector<64x1xf32>
    %15 = vector.broadcast %14 : vector<64x1xf32> to vector<64x256xf32>
    %16 = arith.mulf %6, %15 : vector<64x256xf32>
    %c0_5 = arith.constant 0 : index
    %c0_6 = arith.constant 0 : index
    %17 = vector.load %arg2[%c0_5, %c0_6] : memref<2x256xf32, #tpu.memory_space<vmem>>, vector<1x256xf32>
    %18 = vector.broadcast %17 : vector<1x256xf32> to vector<64x256xf32>
    %19 = arith.mulf %16, %18 : vector<64x256xf32>
    %c1 = arith.constant 1 : index
    %c0_7 = arith.constant 0 : index
    %20 = vector.load %arg2[%c1, %c0_7] : memref<2x256xf32, #tpu.memory_space<vmem>>, vector<1x256xf32>
    %21 = vector.broadcast %20 : vector<1x256xf32> to vector<64x256xf32>
    %22 = arith.addf %19, %21 : vector<64x256xf32>
    %c0_8 = arith.constant 0 : index
    %c0_9 = arith.constant 0 : index
    %23 = vector.load %arg3[%c0_8, %c0_9] : memref<256x128xf32, #tpu.memory_space<vmem>>, vector<256x128xf32>
    %cst_10 = arith.constant dense<0.000000e+00> : vector<64x128xf32>
    %24 = tpu.matmul %22, %23, %cst_10 {dimension_numbers = #tpu.dot_dimension_numbers<[1], [0], [0], [1], [0, 0, 1, 1], [], []>} : vector<64x256xf32>, vector<256x128xf32>, vector<64x128xf32> -> vector<64x128xf32>
    %c0_11 = arith.constant 0 : index
    %c0_12 = arith.constant 0 : index
    %25 = vector.load %arg4[%c0_11, %c0_12] : memref<64x128xf32, #tpu.memory_space<vmem>>, vector<64x128xf32>
    tpu.vector_store %arg4[%c0_11, %c0_12], %24 {strides = array<i32>} : memref<64x128xf32, #tpu.memory_space<vmem>>, vector<64x128xf32>,
    return
  }
  func.func @transform_0(%arg0: i32) -> (i32, i32) {
    %c0_i32 = arith.constant 0 : i32
    %c0_i32_0 = arith.constant 0 : i32
    return %arg0, %c0_i32 : i32, i32
  }
  func.func @transform_1(%arg0: i32) -> (i32, i32) {
    %c0_i32 = arith.constant 0 : i32
    %c0_i32_0 = arith.constant 0 : i32
    %c0_i32_1 = arith.constant 0 : i32
    return %c0_i32, %c0_i32_0 : i32, i32
  }
  func.func @transform_2(%arg0: i32) -> (i32, i32) {
    %c0_i32 = arith.constant 0 : i32
    %c0_i32_0 = arith.constant 0 : i32
    %c0_i32_1 = arith.constant 0 : i32
    return %c0_i32, %c0_i32_0 : i32, i32
  }
  func.func @transform_3(%arg0: i32) -> (i32, i32) {
    %c0_i32 = arith.constant 0 : i32
    %c0_i32_0 = arith.constant 0 : i32
    return %arg0, %c0_i32 : i32, i32
  }
}

</mosaic_0001>

<llo_original>
// kernel: tpu_custom_call.1
$region0: #{tpu_custom_call.1}
  #allocation0 [shape = 'u32[]', space=smem, size = 0x4, offset = 0x4, fixed_abs, tag = 'smem constant byte address 0x4 - core index']
  #allocation1 [shape = 'u32[144,128]{1,0:T(1,128)}', space=vmem, size = 0x12000, scoped, tag = 'internal scratch']
  %s0 = inlined_call_operand.hbm [shape: f32[64,256], index: 0, kind: input, shape index: {}]
  %s1 = inlined_call_operand.hbm [shape: f32[2,256], index: 1, kind: input, shape index: {}]
  %s2 = inlined_call_operand.hbm [shape: f32[256,128], index: 2, kind: input, shape index: {}]
  %s3 = inlined_call_operand.hbm [shape: f32[64,128], index: 3, kind: output, shape index: {}]
  %s4 = sld [smem:[#allocation0]]
  $region34: #{tpu_custom_call.1} parent=0
    _
  %s6 = ssub.s32 1, %s4
  %s7 = scalar_select 0, %s6, %s4
  $region1: #{tpu_custom_call.1} parent=0
    #allocation2 [shape = 'u8[65536]{0}', space=vmem, size = 0x10000, scoped, tag = 'input window, operand 0, single buffered']
    #allocation3 [shape = 's32[1]{0}', space=sflag, size = 0x4, scoped, tag = 'scoped memory for tpu_custom_call.1']
    #allocation4 [shape = 's32[1]{0}', space=sflag, size = 0x4, scoped, tag = 'scoped memory for tpu_custom_call.1']
    #allocation5 [shape = 'u8[2048]{0}', space=vmem, size = 0x800, scoped, tag = 'input window, operand 1, single buffered']
    #allocation6 [shape = 's32[1]{0}', space=sflag, size = 0x4, scoped, tag = 'scoped memory for tpu_custom_call.1']
    #allocation7 [shape = 'u8[131072]{0}', space=vmem, size = 0x20000, scoped, tag = 'input window, operand 2, single buffered']
    #allocation8 [shape = 'u8[32768]{0}', space=vmem, size = 0x8000, scoped, tag = 'output window, operand 0, single buffered']
    %8 = vsyncpa [#allocation3], 0
    %9 = vsyncpa [#allocation6], 0
    %10 = vsyncpa [#allocation4], 0
    // Predicated region
    $region2: #{tpu_custom_call.1} parent=1 // pred_check
      _
    $region3: #{tpu_custom_call.1} parent=1 // pred_check_branch
      %12 = sbr.rel (0) target = $region5
    $region4: #{tpu_custom_call.1} parent=1 // pred_region
      %s14 = ssub.s32 2048, 2048
      %15 = vsyncadd [#allocation3], %s14
      %s16 = sshll.u32 [#allocation2], 4
      %s17 = int_to_ptr.vmem [resolvable:$true] %s16
      %22 = dma.hbm_to_vmem [thread:$0]  %s0, 2048, %s17, [#allocation3], 256, 256, 16
    $region5: #{tpu_custom_call.1} parent=1 // pred_fallthru
      _
    // Predicated region
    $region6: #{tpu_custom_call.1} parent=1 // pred_check
      _
    $region7: #{tpu_custom_call.1} parent=1 // pred_check_branch
      %24 = sbr.rel (0) target = $region9
    $region8: #{tpu_custom_call.1} parent=1 // pred_region
      %s26 = ssub.s32 64, 64
      %27 = vsyncadd [#allocation6], %s26
      %s29 = sshll.u32 [#allocation5], 4
      %s30 = int_to_ptr.vmem [resolvable:$true] %s29
      %32 = dma.hbm_to_vmem [thread:$0]  %s1, 64, %s30, [#allocation6]
    $region9: #{tpu_custom_call.1} parent=1 // pred_fallthru
      _
    // Predicated region
    $region10: #{tpu_custom_call.1} parent=1 // pred_check
      _
    $region11: #{tpu_custom_call.1} parent=1 // pred_check_branch
      %34 = sbr.rel (0) target = $region13
    $region12: #{tpu_custom_call.1} parent=1 // pred_region
      %s36 = ssub.s32 4096, 4096
      %37 = vsyncadd [#allocation6], %s36
      %s38 = sshll.u32 [#allocation7], 4
      %s39 = int_to_ptr.vmem [resolvable:$true] %s38
      %44 = dma.hbm_to_vmem [thread:$0]  %s2, 4096, %s39, [#allocation6], 128, 128, 8
    $region13: #{tpu_custom_call.1} parent=1 // pred_fallthru
      _
    // Predicated region
    $region14: #{tpu_custom_call.1} parent=1 // pred_check
      _
    $region15: #{tpu_custom_call.1} parent=1 // pred_check_branch
      %46 = sbr.rel (0) target = $region17
    $region16: #{tpu_custom_call.1} parent=1 // pred_region
      %47 = dma.done [#allocation3], 2048
    $region17: #{tpu_custom_call.1} parent=1 // pred_fallthru
      _
    // Predicated region
    $region18: #{tpu_custom_call.1} parent=1 // pred_check
      _
    $region19: #{tpu_custom_call.1} parent=1 // pred_check_branch
      %49 = sbr.rel (0) target = $region21
    $region20: #{tpu_custom_call.1} parent=1 // pred_region
      %50 = dma.done [#allocation6], 64
    $region21: #{tpu_custom_call.1} parent=1 // pred_fallthru
      _
    // Predicated region
    $region22: #{tpu_custom_call.1} parent=1 // pred_check
      _
    $region23: #{tpu_custom_call.1} parent=1 // pred_check_branch
      %52 = sbr.rel (0) target = $region25
    $region24: #{tpu_custom_call.1} parent=1 // pred_region
      %53 = dma.done [#allocation6], 4096
    $region25: #{tpu_custom_call.1} parent=1 // pred_fallthru
      _
    %v54 = vld [vmem:[#allocation2] sm:$0xff]
    %v55 = vld [vmem:[#allocation2 + $0x8] sm:$0xff]
    %v56 = vld [vmem:[#allocation2 + $0x10] sm:$0xff]
    %v57 = vld [vmem:[#allocation2 + $0x18] sm:$0xff]
    %v58 = vld [vmem:[#allocation2 + $0x20] sm:$0xff]
    %v59 = vld [vmem:[#allocation2 + $0x28] sm:$0xff]
    %v60 = vld [vmem:[#allocation2 + $0x30] sm:$0xff]
    %v61 = vld [vmem:[#allocation2 + $0x38] sm:$0xff]
    %v62 = vld [vmem:[#allocation2 + $0x40] sm:$0xff]
    %v63 = vld [vmem:[#allocation2 + $0x48] sm:$0xff]
    %v64 = vld [vmem:[#allocation2 + $0x50] sm:$0xff]
    %v65 = vld [vmem:[#allocation2 + $0x58] sm:$0xff]
    %v66 = vld [vmem:[#allocation2 + $0x60] sm:$0xff]
    %v67 = vld [vmem:[#allocation2 + $0x68] sm:$0xff]
    %v68 = vld [vmem:[#allocation2 + $0x70] sm:$0xff]
    %v69 = vld [vmem:[#allocation2 + $0x78] sm:$0xff]
    %v70 = vadd.f32 %v54, %v55
    %71 = vadd.xlane.f32.xlu0 %v70
    %v72 = vpop.xlane.xlu0 %71
    %v73 = vadd.f32 %v56, %v57
    %74 = vadd.xlane.f32.xlu0 %v73
    %v75 = vpop.xlane.xlu0 %74
    %v76 = vadd.f32 %v58, %v59
    %77 = vadd.xlane.f32.xlu0 %v76
    %v78 = vpop.xlane.xlu0 %77
    %v79 = vadd.f32 %v60, %v61
    %80 = vadd.xlane.f32.xlu0 %v79
    %v81 = vpop.xlane.xlu0 %80
    %v82 = vadd.f32 %v62, %v63
    %83 = vadd.xlane.f32.xlu0 %v82
    %v84 = vpop.xlane.xlu0 %83
    %v85 = vadd.f32 %v64, %v65
    %86 = vadd.xlane.f32.xlu0 %v85
    %v87 = vpop.xlane.xlu0 %86
    %v88 = vadd.f32 %v66, %v67
    %89 = vadd.xlane.f32.xlu0 %v88
    %v90 = vpop.xlane.xlu0 %89
    %v91 = vadd.f32 %v68, %v69
    %92 = vadd.xlane.f32.xlu0 %v91
    %v93 = vpop.xlane.xlu0 %92
    %v94 = vrcp.pop 256.0
    %v95 = vmul.f32 %v72, %v94
    %v96 = vmul.f32 %v75, %v94
    %v97 = vmul.f32 %v78, %v94
    %v98 = vmul.f32 %v81, %v94
    %v99 = vmul.f32 %v84, %v94
    %v100 = vmul.f32 %v87, %v94
    %v101 = vmul.f32 %v90, %v94
    %v102 = vmul.f32 %v93, %v94
    %v103 = vsub.f32 %v54, %v95
    %v104 = vsub.f32 %v55, %v95
    %v105 = vsub.f32 %v56, %v96
    %v106 = vsub.f32 %v57, %v96
    %v107 = vsub.f32 %v58, %v97
    %v108 = vsub.f32 %v59, %v97
    %v109 = vsub.f32 %v60, %v98
    %v110 = vsub.f32 %v61, %v98
    %v111 = vsub.f32 %v62, %v99
    %v112 = vsub.f32 %v63, %v99
    %v113 = vsub.f32 %v64, %v100
    %v114 = vsub.f32 %v65, %v100
    %v115 = vsub.f32 %v66, %v101
    %v116 = vsub.f32 %v67, %v101
    %v117 = vsub.f32 %v68, %v102
    %v118 = vsub.f32 %v69, %v102
    %v119 = vmul.f32 %v103, %v103
    %v120 = vmul.f32 %v104, %v104
    %v121 = vmul.f32 %v105, %v105
    %v122 = vmul.f32 %v106, %v106
    %v123 = vmul.f32 %v107, %v107
    %v124 = vmul.f32 %v108, %v108
    %v125 = vmul.f32 %v109, %v109
    %v126 = vmul.f32 %v110, %v110
    %v127 = vmul.f32 %v111, %v111
    %v128 = vmul.f32 %v112, %v112
    %v129 = vmul.f32 %v113, %v113
    %v130 = vmul.f32 %v114, %v114
    %v131 = vmul.f32 %v115, %v115
    %v132 = vmul.f32 %v116, %v116
    %v133 = vmul.f32 %v117, %v117
    %v134 = vmul.f32 %v118, %v118
    %v135 = vadd.f32 %v119, %v120
    %136 = vadd.xlane.f32.xlu0 %v135
    %v137 = vpop.xlane.xlu0 %136
    %v138 = vadd.f32 %v121, %v122
    %139 = vadd.xlane.f32.xlu0 %v138
    %v140 = vpop.xlane.xlu0 %139
    %v141 = vadd.f32 %v123, %v124
    %142 = vadd.xlane.f32.xlu0 %v141
    %v143 = vpop.xlane.xlu0 %142
    %v144 = vadd.f32 %v125, %v126
    %145 = vadd.xlane.f32.xlu0 %v144
    %v146 = vpop.xlane.xlu0 %145
    %v147 = vadd.f32 %v127, %v128
    %148 = vadd.xlane.f32.xlu0 %v147
    %v149 = vpop.xlane.xlu0 %148
    %v150 = vadd.f32 %v129, %v130
    %151 = vadd.xlane.f32.xlu0 %v150
    %v152 = vpop.xlane.xlu0 %151
    %v153 = vadd.f32 %v131, %v132
    %154 = vadd.xlane.f32.xlu0 %v153
    %v155 = vpop.xlane.xlu0 %154
    %v156 = vadd.f32 %v133, %v134
    %157 = vadd.xlane.f32.xlu0 %v156
    %v158 = vpop.xlane.xlu0 %157
    %v159 = vmul.f32 %v137, %v94
    %v160 = vmul.f32 %v140, %v94
    %v161 = vmul.f32 %v143, %v94
    %v162 = vmul.f32 %v146, %v94
    %v163 = vmul.f32 %v149, %v94
    %v164 = vmul.f32 %v152, %v94
    %v165 = vmul.f32 %v155, %v94
    %v166 = vmul.f32 %v158, %v94
    %v167 = vadd.f32 %v159, 1e-06
    %v168 = vadd.f32 %v160, 1e-06
    %v169 = vadd.f32 %v161, 1e-06
    %v170 = vadd.f32 %v162, 1e-06
    %v171 = vadd.f32 %v163, 1e-06
    %v172 = vadd.f32 %v164, 1e-06
    %v173 = vadd.f32 %v165, 1e-06
    %v174 = vadd.f32 %v166, 1e-06
    %v175 = vrsqrt.pop %v167
    %v176 = vrsqrt.pop %v168
    %v177 = vrsqrt.pop %v169
    %v178 = vrsqrt.pop %v170
    %v179 = vrsqrt.pop %v171
    %v180 = vrsqrt.pop %v172
    %v181 = vrsqrt.pop %v173
    %v182 = vrsqrt.pop %v174
    %v183 = vmul.f32 %v103, %v175
    %v184 = vmul.f32 %v104, %v175
    %v185 = vmul.f32 %v105, %v176
    %v186 = vmul.f32 %v106, %v176
    %v187 = vmul.f32 %v107, %v177
    %v188 = vmul.f32 %v108, %v177
    %v189 = vmul.f32 %v109, %v178
    %v190 = vmul.f32 %v110, %v178
    %v191 = vmul.f32 %v111, %v179
    %v192 = vmul.f32 %v112, %v179
    %v193 = vmul.f32 %v113, %v180
    %v194 = vmul.f32 %v114, %v180
    %v195 = vmul.f32 %v115, %v181
    %v196 = vmul.f32 %v116, %v181
    %v197 = vmul.f32 %v117, %v182
    %v198 = vmul.f32 %v118, %v182
    %v199 = vld [vmem:[#allocation5] ss:$2 sm:$0x3]
    %v201 = vlaneseq
    %v202 = vshrl.u32 %v201, 7
    %v203 = vsub.s32 0, %v202
    %v204 = vrot.slane %v199, %v203
    %v205 = vlaneseq
    %v206 = vshrl.u32 %v205, 7
    %v207 = vsub.s32 1, %v206
    %v208 = vrot.slane %v199, %v207
    %v211 = vmul.f32 %v183, %v204
    %v212 = vmul.f32 %v184, %v208
    %v213 = vmul.f32 %v185, %v204
    %v214 = vmul.f32 %v186, %v208
    %v215 = vmul.f32 %v187, %v204
    %v216 = vmul.f32 %v188, %v208
    %v217 = vmul.f32 %v189, %v204
    %v218 = vmul.f32 %v190, %v208
    %v219 = vmul.f32 %v191, %v204
    %v220 = vmul.f32 %v192, %v208
    %v221 = vmul.f32 %v193, %v204
    %v222 = vmul.f32 %v194, %v208
    %v223 = vmul.f32 %v195, %v204
    %v224 = vmul.f32 %v196, %v208
    %v225 = vmul.f32 %v197, %v204
    %v226 = vmul.f32 %v198, %v208
    %s227 = scalar_lea.vmem [#allocation5], 1
    %v228 = vld [vmem:[%s227] ss:$2 sm:$0x3]
    %v230 = vlaneseq
    %v231 = vshrl.u32 %v230, 7
    %v232 = vsub.s32 0, %v231
    %v233 = vrot.slane %v228, %v232
    %v234 = vlaneseq
    %v235 = vshrl.u32 %v234, 7
    %v236 = vsub.s32 1, %v235
    %v237 = vrot.slane %v228, %v236
    %v240 = vadd.f32 %v211, %v233
    %v241 = vadd.f32 %v212, %v237
    %v242 = vadd.f32 %v213, %v233
    %v243 = vadd.f32 %v214, %v237
    %v244 = vadd.f32 %v215, %v233
    %v245 = vadd.f32 %v216, %v237
    %v246 = vadd.f32 %v217, %v233
    %v247 = vadd.f32 %v218, %v237
    %v248 = vadd.f32 %v219, %v233
    %v249 = vadd.f32 %v220, %v237
    %v250 = vadd.f32 %v221, %v233
    %v251 = vadd.f32 %v222, %v237
    %v252 = vadd.f32 %v223, %v233
    %v253 = vadd.f32 %v224, %v237
    %v254 = vadd.f32 %v225, %v233
    %v255 = vadd.f32 %v226, %v237
    %v256 = vld [vmem:[#allocation7] sm:$0xff]
    %v257 = vld [vmem:[#allocation7 + $0x8] sm:$0xff]
    %v258 = vld [vmem:[#allocation7 + $0x10] sm:$0xff]
    %v259 = vld [vmem:[#allocation7 + $0x18] sm:$0xff]
    %v260 = vld [vmem:[#allocation7 + $0x20] sm:$0xff]
    %v261 = vld [vmem:[#allocation7 + $0x28] sm:$0xff]
    %v262 = vld [vmem:[#allocation7 + $0x30] sm:$0xff]
    %v263 = vld [vmem:[#allocation7 + $0x38] sm:$0xff]
    %v264 = vld [vmem:[#allocation7 + $0x40] sm:$0xff]
    %v265 = vld [vmem:[#allocation7 + $0x48] sm:$0xff]
    %v266 = vld [vmem:[#allocation7 + $0x50] sm:$0xff]
    %v267 = vld [vmem:[#allocation7 + $0x58] sm:$0xff]
    %v268 = vld [vmem:[#allocation7 + $0x60] sm:$0xff]
    %v269 = vld [vmem:[#allocation7 + $0x68] sm:$0xff]
    %v270 = vld [vmem:[#allocation7 + $0x70] sm:$0xff]
    %v271 = vld [vmem:[#allocation7 + $0x78] sm:$0xff]
    %v272 = vld [vmem:[#allocation7 + $0x80] sm:$0xff]
    %v273 = vld [vmem:[#allocation7 + $0x88] sm:$0xff]
    %v274 = vld [vmem:[#allocation7 + $0x90] sm:$0xff]
    %v275 = vld [vmem:[#allocation7 + $0x98] sm:$0xff]
    %v276 = vld [vmem:[#allocation7 + $0xa0] sm:$0xff]
    %v277 = vld [vmem:[#allocation7 + $0xa8] sm:$0xff]
    %v278 = vld [vmem:[#allocation7 + $0xb0] sm:$0xff]
    %v279 = vld [vmem:[#allocation7 + $0xb8] sm:$0xff]
    %v280 = vld [vmem:[#allocation7 + $0xc0] sm:$0xff]
    %v281 = vld [vmem:[#allocation7 + $0xc8] sm:$0xff]
    %v282 = vld [vmem:[#allocation7 + $0xd0] sm:$0xff]
    %v283 = vld [vmem:[#allocation7 + $0xd8] sm:$0xff]
    %v284 = vld [vmem:[#allocation7 + $0xe0] sm:$0xff]
    %v285 = vld [vmem:[#allocation7 + $0xe8] sm:$0xff]
    %v286 = vld [vmem:[#allocation7 + $0xf0] sm:$0xff]
    %v287 = vld [vmem:[#allocation7 + $0xf8] sm:$0xff]
    %288 = vmatprep.subr.mxu0 0.0
    %289 = vmatpush1.msra.mxu0 %v271
    %290 = vmatprep.subr.mxu0 0.0
    %291 = vmatpush1.msra.mxu0 %v270
    %292 = vmatprep.subr.mxu0 0.0
    %293 = vmatpush1.msra.mxu0 %v269
    %294 = vmatprep.subr.mxu0 0.0
    %295 = vmatpush1.msra.mxu0 %v268
    %296 = vmatprep.subr.mxu0 0.0
    %297 = vmatpush1.msra.mxu0 %v267
    %298 = vmatprep.subr.mxu0 0.0
    %299 = vmatpush1.msra.mxu0 %v266
    %300 = vmatprep.subr.mxu0 0.0
    %301 = vmatpush1.msra.mxu0 %v265
    %302 = vmatprep.subr.mxu0 0.0
    %303 = vmatpush1.msra.mxu0 %v264
    %304 = vmatprep.subr.mxu0 0.0
    %305 = vmatpush1.msra.mxu0 %v263
    %306 = vmatprep.subr.mxu0 0.0
    %307 = vmatpush1.msra.mxu0 %v262
    %308 = vmatprep.subr.mxu0 0.0
    %309 = vmatpush1.msra.mxu0 %v261
    %310 = vmatprep.subr.mxu0 0.0
    %311 = vmatpush1.msra.mxu0 %v260
    %312 = vmatprep.subr.mxu0 0.0
    %313 = vmatpush1.msra.mxu0 %v259
    %314 = vmatprep.subr.mxu0 0.0
    %315 = vmatpush1.msra.mxu0 %v258
    %316 = vmatprep.subr.mxu0 0.0
    %317 = vmatpush1.msra.mxu0 %v257
    %318 = vmatprep.subr.mxu0 0.0
    %319 = vmatpush1.msra.mxu0 %v256
    %320 = vmatprep.subr.mxu0 0.0
    %321 = vmatpush2.msra.mxu0 %v287
    %322 = vmatprep.subr.mxu0 0.0
    %323 = vmatpush2.msra.mxu0 %v286
    %324 = vmatprep.subr.mxu0 0.0
    %325 = vmatpush2.msra.mxu0 %v285
    %326 = vmatprep.subr.mxu0 0.0
    %327 = vmatpush2.msra.mxu0 %v284
    %328 = vmatprep.subr.mxu0 0.0
    %329 = vmatpush2.msra.mxu0 %v283
    %330 = vmatprep.subr.mxu0 0.0
    %331 = vmatpush2.msra.mxu0 %v282
    %332 = vmatprep.subr.mxu0 0.0
    %333 = vmatpush2.msra.mxu0 %v281
    %334 = vmatprep.subr.mxu0 0.0
    %335 = vmatpush2.msra.mxu0 %v280
    %336 = vmatprep.subr.mxu0 0.0
    %337 = vmatpush2.msra.mxu0 %v279
    %338 = vmatprep.subr.mxu0 0.0
    %339 = vmatpush2.msra.mxu0 %v278
    %340 = vmatprep.subr.mxu0 0.0
    %341 = vmatpush2.msra.mxu0 %v277
    %342 = vmatprep.subr.mxu0 0.0
    %343 = vmatpush2.msra.mxu0 %v276
    %344 = vmatprep.subr.mxu0 0.0
    %345 = vmatpush2.msra.mxu0 %v275
    %346 = vmatprep.subr.mxu0 0.0
    %347 = vmatpush2.msra.mxu0 %v274
    %348 = vmatprep.subr.mxu0 0.0
    %349 = vmatpush2.msra.mxu0 %v273
    %350 = vmatprep.subr.mxu0 0.0
    %351 = vmatpush2.msra.mxu0 %v272
    %352 = vmatprep.mubr.f32.mxu0 %v241
    %353 = vmatmul.mubr.f32.gmra.mxu0 %v240
    %v354 = vpop.f32.mrf.mxu0
    %v355 = vadd.f32 0.0, %v354
    %v356 = vpop.f32.mrf.mxu0
    %357 = vmatprep.mubr.f32.mxu0 %v243
    %358 = vmatmul.mubr.f32.gmra.mxu0 %v242
    %v359 = vpop.f32.mrf.mxu0
    %v360 = vadd.f32 0.0, %v359
    %v361 = vpop.f32.mrf.mxu0
    %362 = vmatprep.mubr.f32.mxu0 %v245
    %363 = vmatmul.mubr.f32.gmra.mxu0 %v244
    %v364 = vpop.f32.mrf.mxu0
    %v365 = vadd.f32 0.0, %v364
    %v366 = vpop.f32.mrf.mxu0
    %367 = vmatprep.mubr.f32.mxu0 %v247
    %368 = vmatmul.mubr.f32.gmra.mxu0 %v246
    %v369 = vpop.f32.mrf.mxu0
    %v370 = vadd.f32 0.0, %v369
    %v371 = vpop.f32.mrf.mxu0
    %372 = vmatprep.mubr.f32.mxu0 %v249
    %373 = vmatmul.mubr.f32.gmra.mxu0 %v248
    %v374 = vpop.f32.mrf.mxu0
    %v375 = vadd.f32 0.0, %v374
    %v376 = vpop.f32.mrf.mxu0
    %377 = vmatprep.mubr.f32.mxu0 %v251
    %378 = vmatmul.mubr.f32.gmra.mxu0 %v250
    %v379 = vpop.f32.mrf.mxu0
    %v380 = vadd.f32 0.0, %v379
    %v381 = vpop.f32.mrf.mxu0
    %382 = vmatprep.mubr.f32.mxu0 %v253
    %383 = vmatmul.mubr.f32.gmra.mxu0 %v252
    %v384 = vpop.f32.mrf.mxu0
    %v385 = vadd.f32 0.0, %v384
    %v386 = vpop.f32.mrf.mxu0
    %387 = vmatprep.mubr.f32.mxu0 %v255
    %388 = vmatmul.mubr.f32.gmra.mxu0 %v254
    %v389 = vpop.f32.mrf.mxu0
    %v390 = vadd.f32 0.0, %v389
    %v391 = vpop.f32.mrf.mxu0
    %392 = vdwg.mxu0
    %393 = vst [vmem:[#allocation8] sm:$0xff] %v355
    %394 = vst [vmem:[#allocation8 + $0x8] sm:$0xff] %v360
    %395 = vst [vmem:[#allocation8 + $0x10] sm:$0xff] %v365
    %396 = vst [vmem:[#allocation8 + $0x18] sm:$0xff] %v370
    %397 = vst [vmem:[#allocation8 + $0x20] sm:$0xff] %v375
    %398 = vst [vmem:[#allocation8 + $0x28] sm:$0xff] %v380
    %399 = vst [vmem:[#allocation8 + $0x30] sm:$0xff] %v385
    %400 = vst [vmem:[#allocation8 + $0x38] sm:$0xff] %v390
    // Predicated region
    $region26: #{tpu_custom_call.1} parent=1 // pred_check
      _
    $region27: #{tpu_custom_call.1} parent=1 // pred_check_branch
      %402 = sbr.rel (0) target = $region29
    $region28: #{tpu_custom_call.1} parent=1 // pred_region
      %s404 = ssub.s32 1024, 1024
      %405 = vsyncadd [#allocation4], %s404
      %s406 = sshll.u32 [#allocation8], 4
      %s407 = int_to_ptr.vmem [resolvable:$true] %s406
      %412 = dma.vmem_to_hbm [thread:$0]  %s407, 1024, %s3, [#allocation4], 128, 128, 8
    $region29: #{tpu_custom_call.1} parent=1 // pred_fallthru
      _
    // Predicated region
    $region30: #{tpu_custom_call.1} parent=1 // pred_check
      _
    $region31: #{tpu_custom_call.1} parent=1 // pred_check_branch
      %414 = sbr.rel (0) target = $region33
    $region32: #{tpu_custom_call.1} parent=1 // pred_region
      %415 = dma.done [#allocation4], 1024
    $region33: #{tpu_custom_call.1} parent=1 // pred_fallthru
      _
    %416 = vsyncpa [#allocation3], 1
    %417 = vsyncpa [#allocation6], 1
    %418 = vsyncpa [#allocation4], 1

</llo_original>
